<compile_context>
chip_gen: v5e
topology: v5e:2x2
jax: 0.10.0
libtpu: 0.0.40
codegen_flags: <defaults>
</compile_context>

<pallas_src>
import jax
import jax.numpy as jnp
from jax import lax
from jax.experimental import pallas as pl
from jax.experimental.pallas import tpu as pltpu

EPS = 1e-12


# ---------------------------------------------------------------------------
# Kernel 1: one power iteration + 1/sigma.  VPU broadcast-multiply + reductions
# only (the (8,36) weight would occupy <1% of the MXU).  No weight writeback.
#   w_ref : (O, Wd)   flattened weight  (Wd = in_ch*kh*kw)
#   u_ref : (O, 1)    current left singular vector estimate
# outputs: u_new (O,1), v_new (1,Wd), inv_sigma (1,1)
# ---------------------------------------------------------------------------
def _spectral_norm_kernel(w_ref, u_ref, u_out_ref, v_out_ref, s_out_ref):
    W = w_ref[...].astype(jnp.float32)                    # (O, Wd)
    u0 = u_ref[...].astype(jnp.float32)                   # (O, 1)

    # v = l2normalize(W^T u)   (broadcast multiply + sublane reduce)
    v_un = jnp.sum(W * u0, axis=0, keepdims=True)         # (1, Wd)
    v = v_un / (jnp.sqrt(jnp.sum(v_un * v_un)) + EPS)

    # u_un = W v               (broadcast multiply + lane reduce)
    u_un = jnp.sum(W * v, axis=1, keepdims=True)          # (O, 1)
    u = u_un / (jnp.sqrt(jnp.sum(u_un * u_un)) + EPS)

    # sigma = u . (W v) = u . u_un   -- reuse u_un, no extra product needed.
    sigma = jnp.sum(u * u_un)

    u_out_ref[...] = u.astype(u_out_ref.dtype)
    v_out_ref[...] = v.astype(v_out_ref.dtype)
    s_out_ref[...] = jnp.full((1, 1), 1.0 / sigma, dtype=s_out_ref.dtype)


def spectral_normalize(w_flat, u):
    O, Wd = w_flat.shape
    return pl.pallas_call(
        _spectral_norm_kernel,
        out_shape=(
            jax.ShapeDtypeStruct((O, 1), jnp.float32),   # u_new
            jax.ShapeDtypeStruct((1, Wd), jnp.float32),  # v_new
            jax.ShapeDtypeStruct((1, 1), jnp.float32),   # 1 / sigma
        ),
    )(w_flat, u.reshape(O, 1))


# ---------------------------------------------------------------------------
# Kernel 2: fused (im2col-in-VMEM) 3x3 conv, scaled by 1/sigma, plus bias.
#   x_pad  : (N, C, H*W + 2*(W+1))  row-flattened activations, zero-padded by
#            (W+1) on both ends of the flattened spatial axis.
#   w_taps : (9, O, C)  un-normalized weight, tap-major ([dy*3+dx, o, c]).
#   bias   : (O, 1)
#   inv_sigma : (1, 1)  scalar, lives in SMEM inside the kernel.
# output  : (N, O, H*W)  -- lane-dense, reshapes for free to NCHW.
# ---------------------------------------------------------------------------
def conv3x3_sn(x_pad, w_taps, bias_col, inv_sigma, H, W):
    N, C, Qp = x_pad.shape
    KHW, O, _ = w_taps.shape
    Q = H * W

    def kernel(s_ref, x_ref, w_ref, b_ref, o_ref):
        inv_s = s_ref[0, 0]                                   # scalar from SMEM

        # Width coordinate of every output lane; used to zero the dx=0 / dx=2
        # taps at the left/right image borders (zero padding).
        col = lax.broadcasted_iota(jnp.int32, (C, Q), 1) % W
        mask_l = col >= 1          # tap reads column w-1 -> invalid at w == 0
        mask_r = col <= W - 2      # tap reads column w+1 -> invalid at w == W-1

        acc = jnp.zeros((O, Q), jnp.float32)
        for dy in range(3):
            for dx in range(3):
                # Tap value for output pixel q = h*W + w is
                #   x_pad[c, (W+1) + (h+dy-1)*W + (w+dx-1)]
                # i.e. a static lane-offset window of the fetched block.
                start = dy * W + dx
                t = x_ref[0, :, pl.ds(start, Q)].astype(jnp.float32)   # (C, Q)
                if dx == 0:
                    t = jnp.where(mask_l, t, 0.0)
                elif dx == 2:
                    t = jnp.where(mask_r, t, 0.0)
                acc += jnp.dot(w_ref[dy * 3 + dx].astype(jnp.float32), t,
                               preferred_element_type=jnp.float32)     # (O, Q)

        # Fold 1/sigma here (no normalized-weight HBM round trip), then bias.
        o_ref[0] = (acc * inv_s + b_ref[...].astype(jnp.float32)).astype(o_ref.dtype)

    flops = 2 * N * Q * KHW * C * O
    bytes_accessed = 4 * (N * C * Qp + KHW * O * C + O + N * O * Q)
    return pl.pallas_call(
        kernel,
        out_shape=jax.ShapeDtypeStruct((N, O, Q), x_pad.dtype),
        grid=(N,),
        in_specs=[
            pl.BlockSpec(memory_space=pltpu.MemorySpace.SMEM),       # 1/sigma scalar
            pl.BlockSpec((1, C, Qp), lambda n: (n, 0, 0)),           # activations
            pl.BlockSpec((KHW, O, C), lambda n: (0, 0, 0)),          # weight taps
            pl.BlockSpec((O, 1), lambda n: (0, 0)),                  # bias
        ],
        out_specs=pl.BlockSpec((1, O, Q), lambda n: (n, 0, 0)),
        compiler_params=pltpu.CompilerParams(
            dimension_semantics=("parallel",),          # megacore-shard the batch
            vmem_limit_bytes=32 * 1024 * 1024),
        cost_estimate=pl.CostEstimate(flops=flops, transcendentals=0,
                                      bytes_accessed=bytes_accessed),
    )(inv_sigma, x_pad, w_taps, bias_col)


# ---------------------------------------------------------------------------
# Full SpectralNorm(Conv2d) forward.
# ---------------------------------------------------------------------------
def spectral_norm_conv_forward(x, w_bar, bias, u, v):
    """Forward of SpectralNorm(Conv2d(in_ch, out_ch, 3, stride=1, padding=1)).

    x     : (N, C, H, W)  NCHW
    w_bar : (O, C, 3, 3)  OIHW
    bias  : (O,)
    u     : (O,)   v: (C*9,)   (v is accepted for interface parity; with
                                power_iterations=1 it is recomputed from u)
    returns (out NCHW, u_new, v_new)
    """
    O, C, KH, KW = w_bar.shape
    N, _, H, W = x.shape
    del v  # overwritten before use in the PyTorch module (power_iterations == 1)

    # --- Pallas kernel 1: power iteration -> u, v, 1/sigma (no weight writeback)
    w_flat = w_bar.reshape(O, C * KH * KW)
    u_new, v_new, inv_sigma = spectral_normalize(w_flat, u)

    # --- Pallas kernel 2: fused im2col + matmul conv, scaled by 1/sigma ---
    # Flatten the spatial dims (free, contiguous) and zero-pad (W+1) on both
    # ends so every 3x3 tap is a static lane-offset slice inside the kernel.
    x_pad = jnp.pad(x.reshape(N, C, H * W), ((0, 0), (0, 0), (W + 1, W + 1)))
    w_taps = w_bar.transpose(2, 3, 0, 1).reshape(KH * KW, O, C)      # (9, O, C)
    out = conv3x3_sn(x_pad, w_taps, bias.reshape(O, 1), inv_sigma, H, W)

    return (out.reshape(N, O, H, W),             # already NCHW, no transpose
            u_new.reshape(O), v_new.reshape(C * KH * KW))


if __name__ == "__main__":
    key = jax.random.PRNGKey(0)
    k_x, k_w, k_b, k_u, k_v = jax.random.split(key, 5)

    N, C, H, W = 2, 4, 16, 16
    O, KH, KW = 8, 3, 3

    x = jax.random.normal(k_x, (N, C, H, W), jnp.float32)
    w_bar = jax.random.normal(k_w, (O, C, KH, KW), jnp.float32) * 0.1
    bias = jax.random.normal(k_b, (O,), jnp.float32) * 0.1

    # u, v initialized as in _make_params: normal(0,1) then l2normalized
    u0 = jax.random.normal(k_u, (O,), jnp.float32)
    v0 = jax.random.normal(k_v, (C * KH * KW,), jnp.float32)
    u0 = u0 / (jnp.linalg.norm(u0) + EPS)
    v0 = v0 / (jnp.linalg.norm(v0) + EPS)

    out, u_new, v_new = spectral_norm_conv_forward(x, w_bar, bias, u0, v0)
    jax.block_until_ready(out)

    # --- reference check in plain JAX (mirrors the PyTorch semantics) ---
    Wf = w_bar.reshape(O, -1)
    v_ref = Wf.T @ u0
    v_ref = v_ref / (jnp.linalg.norm(v_ref) + EPS)
    u_ref = Wf @ v_ref
    u_ref = u_ref / (jnp.linalg.norm(u_ref) + EPS)
    sigma = u_ref @ (Wf @ v_ref)
    w_sn = w_bar / sigma
    out_ref = lax.conv_general_dilated(
        x, w_sn, window_strides=(1, 1), padding=((1, 1), (1, 1)),
        dimension_numbers=("NCHW", "OIHW", "NCHW")) + bias[None, :, None, None]

    assert jnp.allclose(out, out_ref, atol=1e-4, rtol=1e-4), "mismatch vs reference"
    assert jnp.allclose(u_new, u_ref, atol=1e-5), "u mismatch"
    assert jnp.allclose(v_new, v_ref, atol=1e-5), "v mismatch"

    print("KERNEL_OK")
</pallas_src>

<mosaic_0001>
module attributes {stable_mosaic.version = 11 : i64} {
  func.func @_spectral_norm_kernel(%arg0: memref<8x36xf32, #tpu.memory_space<vmem>>, %arg1: memref<8x1xf32, #tpu.memory_space<vmem>>, %arg2: memref<8x1xf32, #tpu.memory_space<vmem>>, %arg3: memref<1x36xf32, #tpu.memory_space<vmem>>, %arg4: memref<1x1xf32, #tpu.memory_space<vmem>>) attributes {dimension_semantics = [], scalar_prefetch = 0 : i64, scratch_operands = 0 : i64, tpu.core_type = #tpu.core_type<tc>} {
    %c0 = arith.constant 0 : index
    %c0_0 = arith.constant 0 : index
    %0 = vector.load %arg0[%c0, %c0_0] : memref<8x36xf32, #tpu.memory_space<vmem>>, vector<8x36xf32>
    %c0_1 = arith.constant 0 : index
    %c0_2 = arith.constant 0 : index
    %1 = vector.load %arg1[%c0_1, %c0_2] : memref<8x1xf32, #tpu.memory_space<vmem>>, vector<8x1xf32>
    %2 = vector.broadcast %1 : vector<8x1xf32> to vector<8x36xf32>
    %3 = arith.mulf %0, %2 : vector<8x36xf32>
    %cst = arith.constant dense<0.000000e+00> : vector<36xf32>
    %4 = vector.multi_reduction <add>, %3, %cst [0] : vector<8x36xf32> to vector<36xf32>
    %5 = vector.shape_cast %4 : vector<36xf32> to vector<1x36xf32>
    %6 = arith.mulf %5, %5 : vector<1x36xf32>
    %7 = vector.shape_cast %6 : vector<1x36xf32> to vector<1x1x36xf32>
    %cst_3 = arith.constant dense<0.000000e+00> : vector<1xf32>
    %8 = vector.multi_reduction <add>, %7, %cst_3 [1, 2] : vector<1x1x36xf32> to vector<1xf32>
    %9 = vector.shape_cast %8 : vector<1xf32> to vector<1x1x1xf32>
    %10 = vector.extract %9[0, 0, 0] : f32 from vector<1x1x1xf32>
    %11 = math.sqrt %10 : f32
    %cst_4 = arith.constant 9.99999996E-13 : f32
    %12 = arith.addf %11, %cst_4 : f32
    %13 = vector.broadcast %12 : f32 to vector<1x36xf32>
    %14 = arith.divf %5, %13 : vector<1x36xf32>
    %15 = vector.broadcast %14 : vector<1x36xf32> to vector<8x36xf32>
    %16 = arith.mulf %0, %15 : vector<8x36xf32>
    %cst_5 = arith.constant dense<0.000000e+00> : vector<8xf32>
    %17 = vector.multi_reduction <add>, %16, %cst_5 [1] : vector<8x36xf32> to vector<8xf32>
    %18 = vector.shape_cast %17 : vector<8xf32> to vector<8x1xf32>
    %19 = arith.mulf %18, %18 : vector<8x1xf32>
    %20 = vector.shape_cast %19 : vector<8x1xf32> to vector<1x8x1xf32>
    %cst_6 = arith.constant dense<0.000000e+00> : vector<1xf32>
    %21 = vector.multi_reduction <add>, %20, %cst_6 [1, 2] : vector<1x8x1xf32> to vector<1xf32>
    %22 = vector.shape_cast %21 : vector<1xf32> to vector<1x1x1xf32>
    %23 = vector.extract %22[0, 0, 0] : f32 from vector<1x1x1xf32>
    %24 = math.sqrt %23 : f32
    %cst_7 = arith.constant 9.99999996E-13 : f32
    %25 = arith.addf %24, %cst_7 : f32
    %26 = vector.broadcast %25 : f32 to vector<8x1xf32>
    %27 = arith.divf %18, %26 : vector<8x1xf32>
    %28 = arith.mulf %27, %18 : vector<8x1xf32>
    %29 = vector.shape_cast %28 : vector<8x1xf32> to vector<1x8x1xf32>
    %cst_8 = arith.constant dense<0.000000e+00> : vector<1xf32>
    %30 = vector.multi_reduction <add>, %29, %cst_8 [1, 2] : vector<1x8x1xf32> to vector<1xf32>
    %31 = vector.shape_cast %30 : vector<1xf32> to vector<1x1x1xf32>
    %32 = vector.extract %31[0, 0, 0] : f32 from vector<1x1x1xf32>
    %c0_9 = arith.constant 0 : index
    %c0_10 = arith.constant 0 : index
    %33 = vector.load %arg2[%c0_9, %c0_10] : memref<8x1xf32, #tpu.memory_space<vmem>>, vector<8x1xf32>
    tpu.vector_store %arg2[%c0_9, %c0_10], %27 {strides = array<i32>} : memref<8x1xf32, #tpu.memory_space<vmem>>, vector<8x1xf32>,
    %c0_11 = arith.constant 0 : index
    %c0_12 = arith.constant 0 : index
    %34 = vector.load %arg3[%c0_11, %c0_12] : memref<1x36xf32, #tpu.memory_space<vmem>>, vector<1x36xf32>
    tpu.vector_store %arg3[%c0_11, %c0_12], %14 {strides = array<i32>} : memref<1x36xf32, #tpu.memory_space<vmem>>, vector<1x36xf32>,
    %cst_13 = arith.constant 1.000000e+00 : f32
    %35 = arith.divf %cst_13, %32 : f32
    %36 = vector.broadcast %35 : f32 to vector<1x1xf32>
    %c0_14 = arith.constant 0 : index
    %c0_15 = arith.constant 0 : index
    %37 = vector.load %arg4[%c0_14, %c0_15] : memref<1x1xf32, #tpu.memory_space<vmem>>, vector<1x1xf32>
    tpu.vector_store %arg4[%c0_14, %c0_15], %36 {strides = array<i32>} : memref<1x1xf32, #tpu.memory_space<vmem>>, vector<1x1xf32>,
    return
  }
}

</mosaic_0001>

<llo_original>
// kernel: tpu_custom_call.1
$region0: #{tpu_custom_call.1}
  #allocation0 [shape = 'u32[]', space=smem, size = 0x4, offset = 0x4, fixed_abs, tag = 'smem constant byte address 0x4 - core index']
  #allocation1 [shape = 'u32[72,128]{1,0:T(1,128)}', space=vmem, size = 0x9000, scoped, tag = 'internal scratch']
  %s0 = inlined_call_operand.vmem [shape: f32[8,36], index: 0, kind: input, shape index: {}]
  %s1 = inlined_call_operand.vmem [shape: f32[8,1], index: 1, kind: input, shape index: {}]
  %s2 = inlined_call_operand.vmem [shape: f32[8,1], index: 2, kind: output, shape index: {0}]
  %s3 = inlined_call_operand.hbm [shape: f32[1,36], index: 3, kind: output, shape index: {1}]
  %s4 = inlined_call_operand.hbm [shape: f32[1,1], index: 4, kind: output, shape index: {2}]
  %5 = xla_tuple %s2, %s3, %s4
  %s6 = sld [smem:[#allocation0]]
  $region34: #{tpu_custom_call.1} parent=0
    _
  %s8 = ssub.s32 1, %s6
  %s9 = scalar_select 0, %s8, %s6
  $region1: #{tpu_custom_call.1} parent=0
    #allocation2 [shape = 'u8[512]{0}', space=vmem, size = 0x400, scoped, tag = 'output window, operand 1, single buffered']
    #allocation3 [shape = 's32[1]{0}', space=sflag, size = 0x4, scoped, tag = 'scoped memory for tpu_custom_call.1']
    #allocation4 [shape = 'u8[512]{0}', space=vmem, size = 0x400, scoped, tag = 'output window, operand 2, single buffered']
    #allocation5 [shape = 's32[1]{0}', space=sflag, size = 0x4, scoped, tag = 'scoped memory for tpu_custom_call.1']
    %10 = vsyncpa [#allocation3], 0
    %11 = vsyncpa [#allocation5], 0
    // Predicated region
    $region2: #{tpu_custom_call.1} parent=1 // pred_check
      _
    $region3: #{tpu_custom_call.1} parent=1 // pred_check_branch
      %13 = sbr.rel (0) target = $region5
    $region4: #{tpu_custom_call.1} parent=1 // pred_region
      _
    $region5: #{tpu_custom_call.1} parent=1 // pred_fallthru
      _
    // Predicated region
    $region6: #{tpu_custom_call.1} parent=1 // pred_check
      _
    $region7: #{tpu_custom_call.1} parent=1 // pred_check_branch
      %15 = sbr.rel (0) target = $region9
    $region8: #{tpu_custom_call.1} parent=1 // pred_region
      _
    $region9: #{tpu_custom_call.1} parent=1 // pred_fallthru
      _
    %v16 = vld [vmem:[%s0] sm:$0xff]
    %v17 = vld [vmem:[%s1] sm:$0xff]
    %19 = vset.pattern.permute.xlu0 0
    %20 = vperm.xlu0 %19, %v17
    %v21 = vpop.permute.xlu0 %20
    %v23 = vmul.f32 %v16, %v21
    %vm24 = vcmask 293888
    %v25 = vsel %vm24, %v23, 0.0
    %v26 = vrot.slane %v25, 4
    %v27 = vadd.f32 %v25, %v26
    %v28 = vrot.slane %v27, 2
    %v29 = vadd.f32 %v27, %v28
    %v30 = vrot.slane %v29, 1
    %v31 = vadd.f32 %v29, %v30
    %v32 = vmul.f32 %v31, %v31
    %vm33 = vcmask 286720
    %v34 = vsel %vm33, %v32, 0.0
    %35 = vadd.xlane.f32.xlu0 %v34
    %v36 = vpop.xlane.xlu0 %35
    %v37 = vrot.slane %v36, 4
    %v38 = vadd.f32 %v36, %v37
    %v39 = vrot.slane %v38, 2
    %v40 = vadd.f32 %v38, %v39
    %v41 = vrot.slane %v40, 1
    %v42 = vadd.f32 %v40, %v41
    %s43 = vtos %v42
    %v44 = vstv %s43
    %v45 = vrsqrt.pop %v44
    %v46 = vmul.f32 %v45, %v44
    %v47 = vmul.f32 %v46, %v45
    %v48 = vmul.f32 0.5, %v47
    %v49 = vsub.f32 1.5, %v48
    %v50 = vmul.f32 %v45, %v49
    %v51 = vmul.f32 %v44, %v50
    %vm52 = vcmp.eq.f32.partialorder %v44, inf
    %v53 = vsel %vm52, %v44, %v51
    %vm54 = vcmp.eq.f32.partialorder %v44, 0.0
    %v55 = vand.u32 %v44, 2147483648
    %v56 = vsel %vm54, %v55, %v53
    %s57 = vtos %v56
    %s58 = sadd.f32 %s57, 1e-12
    %v59 = vstv %s58
    %v60 = vrcp.pop %v59
    %v61 = vmul.f32 %v59, %v60
    %v62 = vsub.f32 1.0, %v61
    %v63 = vmul.f32 %v60, %v62
    %v64 = vadd.f32 %v60, %v63
    %vm65 = vweird.f32 %v59
    %vm66 = vweird.f32 %v60
    %vm67 = vmor %vm65, %vm66
    %v68 = vsel %vm67, %v60, %v64
    %v69 = vand.u32 2147483647, %v59
    %vm70 = vcmp.eq.f32.partialorder %v69, 8.507059e+37
    %v71 = vand.u32 %v59, 2147483648
    %v72 = vor.u32 1.1754944e-38, %v71
    %v73 = vsel %vm70, %v72, %v68
    %v74 = vmul.f32 %v31, %v73
    %v75 = vmul.f32 %v16, %v74
    %v76 = vsel %vm24, %v75, 0.0
    %77 = vadd.xlane.f32.xlu0 %v76
    %v78 = vpop.xlane.xlu0 %77
    %v79 = vmul.f32 %v78, %v78
    %vm80 = vcmask 7168
    %v81 = vsel %vm80, %v79, 0.0
    %82 = vadd.xlane.f32.xlu0 %v81
    %v83 = vpop.xlane.xlu0 %82
    %v84 = vrot.slane %v83, 4
    %v85 = vadd.f32 %v83, %v84
    %v86 = vrot.slane %v85, 2
    %v87 = vadd.f32 %v85, %v86
    %v88 = vrot.slane %v87, 1
    %v89 = vadd.f32 %v87, %v88
    %s90 = vtos %v89
    %v91 = vstv %s90
    %v92 = vrsqrt.pop %v91
    %v93 = vmul.f32 %v92, %v91
    %v94 = vmul.f32 %v93, %v92
    %v95 = vmul.f32 0.5, %v94
    %v96 = vsub.f32 1.5, %v95
    %v97 = vmul.f32 %v92, %v96
    %v98 = vmul.f32 %v91, %v97
    %vm99 = vcmp.eq.f32.partialorder %v91, inf
    %v100 = vsel %vm99, %v91, %v98
    %vm101 = vcmp.eq.f32.partialorder %v91, 0.0
    %v102 = vand.u32 %v91, 2147483648
    %v103 = vsel %vm101, %v102, %v100
    %s104 = vtos %v103
    %s105 = sadd.f32 %s104, 1e-12
    %v106 = vstv %s105
    %v107 = vrcp.pop %v106
    %v108 = vmul.f32 %v106, %v107
    %v109 = vsub.f32 1.0, %v108
    %v110 = vmul.f32 %v107, %v109
    %v111 = vadd.f32 %v107, %v110
    %vm112 = vweird.f32 %v106
    %vm113 = vweird.f32 %v107
    %vm114 = vmor %vm112, %vm113
    %v115 = vsel %vm114, %v107, %v111
    %v116 = vand.u32 2147483647, %v106
    %vm117 = vcmp.eq.f32.partialorder %v116, 8.507059e+37
    %v118 = vand.u32 %v106, 2147483648
    %v119 = vor.u32 1.1754944e-38, %v118
    %v120 = vsel %vm117, %v119, %v115
    %v121 = vmul.f32 %v78, %v120
    %v122 = vmul.f32 %v121, %v78
    %v123 = vsel %vm80, %v122, 0.0
    %124 = vadd.xlane.f32.xlu0 %v123
    %v125 = vpop.xlane.xlu0 %124
    %v126 = vrot.slane %v125, 4
    %v127 = vadd.f32 %v125, %v126
    %v128 = vrot.slane %v127, 2
    %v129 = vadd.f32 %v127, %v128
    %v130 = vrot.slane %v129, 1
    %v131 = vadd.f32 %v129, %v130
    %s132 = vtos %v131
    %133 = vst.msk [vmem:[%s2] sm:$0xff] %vm80, %v121
    %134 = vst.msk [vmem:[#allocation2] sm:$0x1] %vm33, %v74
    %v135 = vstv %s132
    %v136 = vrcp.pop %v135
    %v137 = vmul.f32 %v135, %v136
    %v138 = vsub.f32 1.0, %v137
    %v139 = vmul.f32 %v136, %v138
    %v140 = vadd.f32 %v136, %v139
    %vm141 = vweird.f32 %v135
    %vm142 = vweird.f32 %v136
    %vm143 = vmor %vm141, %vm142
    %v144 = vsel %vm143, %v136, %v140
    %v145 = vand.u32 2147483647, %v135
    %vm146 = vcmp.eq.f32.partialorder %v145, 8.507059e+37
    %v147 = vand.u32 %v135, 2147483648
    %v148 = vor.u32 1.1754944e-38, %v147
    %v149 = vsel %vm146, %v148, %v144
    %s150 = vtos %v149
    %v151 = vstv %s150
    %vm152 = vcmask 0
    %153 = vst.msk [vmem:[#allocation4] sm:$0x1] %vm152, %v151
    // Predicated region
    $region10: #{tpu_custom_call.1} parent=1 // pred_check
      _
    $region11: #{tpu_custom_call.1} parent=1 // pred_check_branch
      %155 = sbr.rel (0) target = $region13
    $region12: #{tpu_custom_call.1} parent=1 // pred_region
      _
    $region13: #{tpu_custom_call.1} parent=1 // pred_fallthru
      _
    // Predicated region
    $region14: #{tpu_custom_call.1} parent=1 // pred_check
      _
    $region15: #{tpu_custom_call.1} parent=1 // pred_check_branch
      %157 = sbr.rel (0) target = $region17
    $region16: #{tpu_custom_call.1} parent=1 // pred_region
      %159 = vsyncadd [#allocation3], 0
      %s161 = sshll.u32 [#allocation2], 4
      %s162 = int_to_ptr.vmem [resolvable:$true] %s161
      %s163 = sshll.u32 %s3, 4
      %s164 = int_to_ptr.hbm [resolvable:$true] %s163
      %166 = dma.vmem_to_hbm [thread:$0]  %s162, 16, %s164, [#allocation3]
    $region17: #{tpu_custom_call.1} parent=1 // pred_fallthru
      _
    // Predicated region
    $region18: #{tpu_custom_call.1} parent=1 // pred_check
      _
    $region19: #{tpu_custom_call.1} parent=1 // pred_check_branch
      %168 = sbr.rel (0) target = $region21
    $region20: #{tpu_custom_call.1} parent=1 // pred_region
      %170 = vsyncadd [#allocation5], 0
      %s172 = sshll.u32 [#allocation4], 4
      %s173 = int_to_ptr.vmem [resolvable:$true] %s172
      %s174 = sshll.u32 %s4, 4
      %s175 = int_to_ptr.hbm [resolvable:$true] %s174
      %177 = dma.vmem_to_hbm [thread:$0]  %s173, 16, %s175, [#allocation5]
    $region21: #{tpu_custom_call.1} parent=1 // pred_fallthru
      _
    // Predicated region
    $region22: #{tpu_custom_call.1} parent=1 // pred_check
      _
    $region23: #{tpu_custom_call.1} parent=1 // pred_check_branch
      %179 = sbr.rel (0) target = $region25
    $region24: #{tpu_custom_call.1} parent=1 // pred_region
      _
    $region25: #{tpu_custom_call.1} parent=1 // pred_fallthru
      _
    // Predicated region
    $region26: #{tpu_custom_call.1} parent=1 // pred_check
      _
    $region27: #{tpu_custom_call.1} parent=1 // pred_check_branch
      %181 = sbr.rel (0) target = $region29
    $region28: #{tpu_custom_call.1} parent=1 // pred_region
      %183 = dma.done [#allocation3], 16
    $region29: #{tpu_custom_call.1} parent=1 // pred_fallthru
      _
    // Predicated region
    $region30: #{tpu_custom_call.1} parent=1 // pred_check
      _
    $region31: #{tpu_custom_call.1} parent=1 // pred_check_branch
      %185 = sbr.rel (0) target = $region33
    $region32: #{tpu_custom_call.1} parent=1 // pred_region
      %187 = dma.done [#allocation5], 16
    $region33: #{tpu_custom_call.1} parent=1 // pred_fallthru
      _
    %188 = vsyncpa [#allocation3], 1
    %189 = vsyncpa [#allocation5], 1

</llo_original>
